<compile_context>
chip_gen: v7x
topology: tpu7x:2x2x1
jax: 0.10.0
libtpu: 0.0.40
codegen_flags: <defaults>
</compile_context>

<pallas_src>
import functools

import jax
import jax.numpy as jnp
from jax.experimental import pallas as pl
from jax.experimental.pallas import tpu as pltpu

# ---- problem sizes (small, consistent with the module) ----
BATCH = 8
NUM_DIMS = 2          # len(observation_space.high), e.g. (x, y)
VOCAB = 16            # observation_space.high for each dim
HIDDEN = 32           # hard-coded hidden_size in the module
FC_DIM = 256          # hard-coded fc layer width
EMBED_DIM = 64        # embed_dim argument

MAX_TILE_B = 256      # batch tile cap (>=256 good for v6e/v7x; fine on v5e)
LANE = 128            # lane width (last-dim padding target)
SUBLANE = 8           # sublane granularity (second-to-last dim)


def _embedder_kernel(idx_ref, fw1_ref, b1_ref, w2_ref, b2_ref, out_ref,
                     *, vocab, num_dims):
    """One batch tile of the fused forward pass.

    idx_ref:  (TILE_B, num_dims) int32
    fw1_ref:  (K_pad, FC_DIM) bf16   -- embeddings folded into fc1, K padded to 128
    b1_ref:   (1, FC_DIM) f32
    w2_ref:   (FC_DIM, E_pad) bf16   -- E_pad = round_up(embed_dim, 128)
    b2_ref:   (1, E_pad) f32
    out_ref:  (TILE_B, E_pad) f32
    """
    idx = idx_ref[...]                                        # (Tb, D) int32
    tile_b = idx_ref.shape[0]
    k_pad = fw1_ref.shape[0]                                  # lane-dense K (128)

    # Single hoisted iota; multi-hot over the concatenated per-dim vocab lanes.
    # Lanes >= num_dims*vocab are never hit (indices < vocab), matching the
    # zero-padded rows of fw1.
    lanes = jax.lax.broadcasted_iota(jnp.int32, (tile_b, k_pad), 1)
    hit = lanes == idx[:, 0:1]
    for d in range(1, num_dims):                              # static unroll
        hit = jnp.logical_or(hit, lanes == (idx[:, d:d + 1] + d * vocab))
    multihot = hit.astype(jnp.bfloat16)                       # (Tb, K_pad)

    # (embedding gather + fc1) fused into one MXU pass, f32 accumulation.
    h = jnp.dot(multihot, fw1_ref[...],
                preferred_element_type=jnp.float32) + b1_ref[...]
    h = jnp.maximum(h, 0.0)                                   # ReLU (f32, VPU)

    out = jnp.dot(h.astype(jnp.bfloat16), w2_ref[...],
                  preferred_element_type=jnp.float32) + b2_ref[...]
    out_ref[...] = out.astype(out_ref.dtype)


def simple_grid_state_embedder(idx, tables, w1, b1, w2, b2,
                               *, max_tile_b=MAX_TILE_B):
    """Wrapper: folds params, pads batch/K/output, launches a batch-gridded call."""
    B = idx.shape[0]
    D, V, H = tables.shape
    F = w1.shape[1]
    E = w2.shape[1]
    E_pad = pl.cdiv(E, LANE) * LANE
    K = D * V
    K_pad = pl.cdiv(K, LANE) * LANE

    # Fold per-dim embedding tables into the first Linear (done once, in JAX):
    #   concat_d(onehot_d @ tables[d]) @ w1 == multihot @ fused_w1
    fused_w1 = jnp.einsum(
        'dvh,dhf->dvf', tables, w1.reshape(D, H, F)).reshape(K, F)
    fw1_p = (jnp.zeros((K_pad, F), jnp.float32)
             .at[:K].set(fused_w1).astype(jnp.bfloat16))

    # Lane-dense (padded-to-128) output path; biases stay f32.
    w2p = jnp.zeros((F, E_pad), jnp.float32).at[:, :E].set(w2).astype(jnp.bfloat16)
    b2p = jnp.zeros((1, E_pad), jnp.float32).at[:, :E].set(b2.reshape(1, E))
    b1r = b1.reshape(1, F).astype(jnp.float32)

    # Batch tile: round_up(B, 8) for small batches, capped at max_tile_b.
    tile_b = min(max_tile_b, SUBLANE * pl.cdiv(B, SUBLANE))
    PB = tile_b * pl.cdiv(B, tile_b)
    idx_p = jnp.zeros((PB, D), jnp.int32).at[:B].set(idx.astype(jnp.int32))
    grid = (PB // tile_b,)

    kernel = functools.partial(_embedder_kernel, vocab=V, num_dims=D)

    cost = pl.CostEstimate(
        flops=2 * PB * (K_pad * F + F * E_pad),
        transcendentals=0,
        bytes_accessed=int(idx_p.size * 4 + fw1_p.size * 2 + b1r.size * 4
                           + w2p.size * 2 + b2p.size * 4 + PB * E_pad * 4),
    )

    out = pl.pallas_call(
        kernel,
        out_shape=jax.ShapeDtypeStruct((PB, E_pad), jnp.float32),
        grid=grid,
        in_specs=[
            pl.BlockSpec((tile_b, D), lambda i: (i, 0)),      # idx: tiled over batch
            pl.BlockSpec((K_pad, F), lambda i: (0, 0)),       # fused_w1: resident
            pl.BlockSpec((1, F), lambda i: (0, 0)),           # b1: resident
            pl.BlockSpec((F, E_pad), lambda i: (0, 0)),       # w2 (padded): resident
            pl.BlockSpec((1, E_pad), lambda i: (0, 0)),       # b2 (padded): resident
        ],
        out_specs=pl.BlockSpec((tile_b, E_pad), lambda i: (i, 0)),
        compiler_params=pltpu.CompilerParams(
            dimension_semantics=("parallel",)),               # v7x: 2 TCs over batch
        cost_estimate=cost,
    )(idx_p, fw1_p, b1r, w2p, b2p)

    return out[:B, :E]


def _reference(idx, tables, w1, b1, w2, b2):
    """Pure-JAX f32 reference mirroring the PyTorch forward."""
    embeds = [tables[d][idx[:, d]] for d in range(tables.shape[0])]
    concat = jnp.concatenate(embeds, axis=-1)
    h = jax.nn.relu(concat @ w1 + b1)
    return h @ w2 + b2


if __name__ == "__main__":
    key = jax.random.PRNGKey(0)
    k_idx, k_tab, k_w1, k_b1, k_w2, k_b2 = jax.random.split(key, 6)

    # Deterministic "observations": list of (x, y) grid cells -> (B, D) int32.
    idx = jax.random.randint(k_idx, (BATCH, NUM_DIMS), 0, VOCAB, dtype=jnp.int32)

    # Deterministic parameters (shapes from the module's __init__); weights are
    # stored (in, out) so y = x @ W + b matches PyTorch's x @ W_pt.T + b.
    tables = jax.random.normal(k_tab, (NUM_DIMS, VOCAB, HIDDEN), jnp.float32)
    w1 = jax.random.normal(k_w1, (NUM_DIMS * HIDDEN, FC_DIM), jnp.float32) * 0.05
    b1 = jax.random.normal(k_b1, (1, FC_DIM), jnp.float32) * 0.05
    w2 = jax.random.normal(k_w2, (FC_DIM, EMBED_DIM), jnp.float32) * 0.05
    b2 = jax.random.normal(k_b2, (1, EMBED_DIM), jnp.float32) * 0.05

    out = simple_grid_state_embedder(idx, tables, w1, b1, w2, b2)
    out = jax.block_until_ready(out)

    ref = _reference(idx, tables, w1, b1, w2, b2)
    assert out.shape == (BATCH, EMBED_DIM)
    # bf16 matmul operands (f32 accumulation) -> loosened tolerance vs f32 ref.
    assert jnp.allclose(out, ref, atol=2e-2, rtol=2e-2), (
        float(jnp.max(jnp.abs(out - ref))))

    print("KERNEL_OK")
</pallas_src>

<mosaic_0001>
module attributes {stable_mosaic.version = 11 : i64} {
  func.func @_embedder_kernel(%arg0: i32, %arg1: memref<8x2xi32, #tpu.memory_space<vmem>>, %arg2: memref<128x256xbf16, #tpu.memory_space<vmem>>, %arg3: memref<1x256xf32, #tpu.memory_space<vmem>>, %arg4: memref<256x128xbf16, #tpu.memory_space<vmem>>, %arg5: memref<1x128xf32, #tpu.memory_space<vmem>>, %arg6: memref<8x128xf32, #tpu.memory_space<vmem>>) attributes {dimension_semantics = [#tpu.dimension_semantics<parallel>], iteration_bounds = array<i64: 1>, scalar_prefetch = 0 : i64, scratch_operands = 0 : i64, tpu.core_type = #tpu.core_type<tc>, window_params = [{transform_indices = @transform_0, window_bounds = array<i64: 8, 2>}, {pipeline_mode = #tpu.pipeline_mode<synchronous>, transform_indices = @transform_1, window_bounds = array<i64: 128, 256>}, {pipeline_mode = #tpu.pipeline_mode<synchronous>, transform_indices = @transform_2, window_bounds = array<i64: 1, 256>}, {pipeline_mode = #tpu.pipeline_mode<synchronous>, transform_indices = @transform_3, window_bounds = array<i64: 256, 128>}, {pipeline_mode = #tpu.pipeline_mode<synchronous>, transform_indices = @transform_4, window_bounds = array<i64: 1, 128>}, {transform_indices = @transform_5, window_bounds = array<i64: 8, 128>}]} {
    %c0 = arith.constant 0 : index
    %c0_0 = arith.constant 0 : index
    %0 = vector.load %arg1[%c0, %c0_0] : memref<8x2xi32, #tpu.memory_space<vmem>>, vector<8x2xi32>
    %1 = tpu.iota {dimensions = array<i32: 1>} : vector<8x128xi32>
    %2 = vector.extract_strided_slice %0 {offsets = [0, 0], sizes = [8, 1], strides = [1, 1]} : vector<8x2xi32> to vector<8x1xi32>
    %3 = vector.broadcast %2 : vector<8x1xi32> to vector<8x128xi32>
    %4 = arith.cmpi eq, %1, %3 : vector<8x128xi32>
    %5 = vector.extract_strided_slice %0 {offsets = [0, 1], sizes = [8, 1], strides = [1, 1]} : vector<8x2xi32> to vector<8x1xi32>
    %c16_i32 = arith.constant 16 : i32
    %6 = vector.broadcast %c16_i32 : i32 to vector<8x1xi32>
    %7 = arith.addi %5, %6 : vector<8x1xi32>
    %8 = vector.broadcast %7 : vector<8x1xi32> to vector<8x128xi32>
    %9 = arith.cmpi eq, %1, %8 : vector<8x128xi32>
    %10 = arith.ori %4, %9 : vector<8x128xi1>
    %11 = arith.extui %10 : vector<8x128xi1> to vector<8x128xi32>
    %12 = arith.sitofp %11 : vector<8x128xi32> to vector<8x128xf32>
    %13 = arith.truncf %12 : vector<8x128xf32> to vector<8x128xbf16>
    %c0_1 = arith.constant 0 : index
    %c0_2 = arith.constant 0 : index
    %14 = vector.load %arg2[%c0_1, %c0_2] : memref<128x256xbf16, #tpu.memory_space<vmem>>, vector<128x256xbf16>
    %cst = arith.constant dense<0.000000e+00> : vector<8x256xf32>
    %15 = tpu.matmul %13, %14, %cst {dimension_numbers = #tpu.dot_dimension_numbers<[1], [0], [0], [1], [0, 0, 1, 1], [], []>} : vector<8x128xbf16>, vector<128x256xbf16>, vector<8x256xf32> -> vector<8x256xf32>
    %c0_3 = arith.constant 0 : index
    %c0_4 = arith.constant 0 : index
    %16 = vector.load %arg3[%c0_3, %c0_4] : memref<1x256xf32, #tpu.memory_space<vmem>>, vector<1x256xf32>
    %17 = vector.broadcast %16 : vector<1x256xf32> to vector<8x256xf32>
    %18 = arith.addf %15, %17 : vector<8x256xf32>
    %cst_5 = arith.constant 0.000000e+00 : f32
    %19 = vector.broadcast %cst_5 : f32 to vector<8x256xf32>
    %20 = arith.maximumf %18, %19 : vector<8x256xf32>
    %21 = arith.truncf %20 : vector<8x256xf32> to vector<8x256xbf16>
    %c0_6 = arith.constant 0 : index
    %c0_7 = arith.constant 0 : index
    %22 = vector.load %arg4[%c0_6, %c0_7] : memref<256x128xbf16, #tpu.memory_space<vmem>>, vector<256x128xbf16>
    %cst_8 = arith.constant dense<0.000000e+00> : vector<8x128xf32>
    %23 = tpu.matmul %21, %22, %cst_8 {dimension_numbers = #tpu.dot_dimension_numbers<[1], [0], [0], [1], [0, 0, 1, 1], [], []>} : vector<8x256xbf16>, vector<256x128xbf16>, vector<8x128xf32> -> vector<8x128xf32>
    %c0_9 = arith.constant 0 : index
    %c0_10 = arith.constant 0 : index
    %24 = vector.load %arg5[%c0_9, %c0_10] : memref<1x128xf32, #tpu.memory_space<vmem>>, vector<1x128xf32>
    %25 = vector.broadcast %24 : vector<1x128xf32> to vector<8x128xf32>
    %26 = arith.addf %23, %25 : vector<8x128xf32>
    %c0_11 = arith.constant 0 : index
    %c0_12 = arith.constant 0 : index
    %27 = vector.load %arg6[%c0_11, %c0_12] : memref<8x128xf32, #tpu.memory_space<vmem>>, vector<8x128xf32>
    tpu.vector_store %arg6[%c0_11, %c0_12], %26 {strides = array<i32>} : memref<8x128xf32, #tpu.memory_space<vmem>>, vector<8x128xf32>,
    return
  }
  func.func @transform_0(%arg0: i32) -> (i32, i32) {
    %c0_i32 = arith.constant 0 : i32
    %c0_i32_0 = arith.constant 0 : i32
    return %arg0, %c0_i32 : i32, i32
  }
  func.func @transform_1(%arg0: i32) -> (i32, i32) {
    %c0_i32 = arith.constant 0 : i32
    %c0_i32_0 = arith.constant 0 : i32
    %c0_i32_1 = arith.constant 0 : i32
    return %c0_i32, %c0_i32_0 : i32, i32
  }
  func.func @transform_2(%arg0: i32) -> (i32, i32) {
    %c0_i32 = arith.constant 0 : i32
    %c0_i32_0 = arith.constant 0 : i32
    %c0_i32_1 = arith.constant 0 : i32
    return %c0_i32, %c0_i32_0 : i32, i32
  }
  func.func @transform_3(%arg0: i32) -> (i32, i32) {
    %c0_i32 = arith.constant 0 : i32
    %c0_i32_0 = arith.constant 0 : i32
    %c0_i32_1 = arith.constant 0 : i32
    return %c0_i32, %c0_i32_0 : i32, i32
  }
  func.func @transform_4(%arg0: i32) -> (i32, i32) {
    %c0_i32 = arith.constant 0 : i32
    %c0_i32_0 = arith.constant 0 : i32
    %c0_i32_1 = arith.constant 0 : i32
    return %c0_i32, %c0_i32_0 : i32, i32
  }
  func.func @transform_5(%arg0: i32) -> (i32, i32) {
    %c0_i32 = arith.constant 0 : i32
    %c0_i32_0 = arith.constant 0 : i32
    return %arg0, %c0_i32 : i32, i32
  }
}

</mosaic_0001>

<llo_original>
// kernel: tpu_custom_call.1
$region0: #{tpu_custom_call.1}
  #allocation0 [shape = 'u32[]', space=smem, size = 0x4, offset = 0x4, fixed_abs, tag = 'smem constant byte address 0x4 - core index']
  #allocation1 [shape = 'u32[144,128]{1,0:T(1,128)}', space=vmem, size = 0x12000, scoped, tag = 'internal scratch']
  %s0 = inlined_call_operand.vmem [shape: s32[8,2], index: 0, kind: input, shape index: {}]
  %s1 = inlined_call_operand.hbm [shape: bf16[128,256], index: 1, kind: input, shape index: {}]
  %s2 = inlined_call_operand.vmem [shape: f32[1,256], index: 2, kind: input, shape index: {}]
  %s3 = inlined_call_operand.hbm [shape: bf16[256,128], index: 3, kind: input, shape index: {}]
  %s4 = inlined_call_operand.vmem [shape: f32[1,128], index: 4, kind: input, shape index: {}]
  %s5 = inlined_call_operand.hbm [shape: f32[8,128], index: 5, kind: output, shape index: {}]
  %s6 = sld [smem:[#allocation0]]
  $region38: #{tpu_custom_call.1} parent=0
    _
  %s8 = ssub.s32 1, %s6
  %s9 = scalar_select 0, %s8, %s6
  $region1: #{tpu_custom_call.1} parent=0
    #allocation2 [shape = 'u8[65536]{0}', space=vmem, size = 0x10000, scoped, tag = 'input window, operand 1, single buffered']
    #allocation3 [shape = 's32[1]{0}', space=sflag, size = 0x4, scoped, tag = 'scoped memory for tpu_custom_call.1']
    #allocation4 [shape = 's32[1]{0}', space=sflag, size = 0x4, scoped, tag = 'scoped memory for tpu_custom_call.1']
    #allocation5 [shape = 'u8[65536]{0}', space=vmem, size = 0x10000, scoped, tag = 'input window, operand 3, single buffered']
    #allocation6 [shape = 's32[1]{0}', space=sflag, size = 0x4, scoped, tag = 'scoped memory for tpu_custom_call.1']
    #allocation7 [shape = 'u8[4096]{0}', space=vmem, size = 0x1000, scoped, tag = 'output window, operand 0, single buffered']
    %10 = vsyncpa [#allocation3], 0
    %11 = vsyncpa [#allocation6], 0
    %12 = vsyncpa [#allocation4], 0
    // Predicated region
    $region2: #{tpu_custom_call.1} parent=1 // pred_check
      _
    $region3: #{tpu_custom_call.1} parent=1 // pred_check_branch
      %14 = sbr.rel (0) target = $region5
    $region4: #{tpu_custom_call.1} parent=1 // pred_region
      _
    $region5: #{tpu_custom_call.1} parent=1 // pred_fallthru
      _
    // Predicated region
    $region6: #{tpu_custom_call.1} parent=1 // pred_check
      _
    $region7: #{tpu_custom_call.1} parent=1 // pred_check_branch
      %16 = sbr.rel (0) target = $region9
    $region8: #{tpu_custom_call.1} parent=1 // pred_region
      %s18 = ssub.s32 2048, 2048
      %19 = vsyncadd [#allocation3], %s18
      %s20 = sshll.u32 [#allocation2], 4
      %s21 = int_to_ptr.vmem [resolvable:$true] %s20
      %26 = dma.hbm_to_vmem [thread:$0]  %s1, 2048, %s21, [#allocation3], 128, 128, 8
    $region9: #{tpu_custom_call.1} parent=1 // pred_fallthru
      _
    // Predicated region
    $region10: #{tpu_custom_call.1} parent=1 // pred_check
      _
    $region11: #{tpu_custom_call.1} parent=1 // pred_check_branch
      %28 = sbr.rel (0) target = $region13
    $region12: #{tpu_custom_call.1} parent=1 // pred_region
      _
    $region13: #{tpu_custom_call.1} parent=1 // pred_fallthru
      _
    // Predicated region
    $region14: #{tpu_custom_call.1} parent=1 // pred_check
      _
    $region15: #{tpu_custom_call.1} parent=1 // pred_check_branch
      %30 = sbr.rel (0) target = $region17
    $region16: #{tpu_custom_call.1} parent=1 // pred_region
      %s32 = ssub.s32 2048, 2048
      %33 = vsyncadd [#allocation6], %s32
      %s34 = sshll.u32 [#allocation5], 4
      %s35 = int_to_ptr.vmem [resolvable:$true] %s34
      %40 = dma.hbm_to_vmem [thread:$0]  %s3, 2048, %s35, [#allocation6], 64, 64, 4
    $region17: #{tpu_custom_call.1} parent=1 // pred_fallthru
      _
    // Predicated region
    $region18: #{tpu_custom_call.1} parent=1 // pred_check
      _
    $region19: #{tpu_custom_call.1} parent=1 // pred_check_branch
      %42 = sbr.rel (0) target = $region21
    $region20: #{tpu_custom_call.1} parent=1 // pred_region
      _
    $region21: #{tpu_custom_call.1} parent=1 // pred_fallthru
      _
    // Predicated region
    $region22: #{tpu_custom_call.1} parent=1 // pred_check
      _
    $region23: #{tpu_custom_call.1} parent=1 // pred_check_branch
      %44 = sbr.rel (0) target = $region25
    $region24: #{tpu_custom_call.1} parent=1 // pred_region
      %45 = dma.done [#allocation3], 2048
    $region25: #{tpu_custom_call.1} parent=1 // pred_fallthru
      _
    // Predicated region
    $region26: #{tpu_custom_call.1} parent=1 // pred_check
      _
    $region27: #{tpu_custom_call.1} parent=1 // pred_check_branch
      %47 = sbr.rel (0) target = $region29
    $region28: #{tpu_custom_call.1} parent=1 // pred_region
      %48 = dma.done [#allocation6], 2048
    $region29: #{tpu_custom_call.1} parent=1 // pred_fallthru
      _
    %v50 = vld [vmem:[%s0] sm:$0xff]
    %v51 = vlaneseq
    %v52 = vand.u32 %v51, 127
    %53 = vset.pattern.permute.xlu0 0
    %54 = vperm.xlu0 %53, %v50
    %v55 = vpop.permute.xlu0 %54
    %vm56 = vcmp.eq.s32.totalorder %v52, %v55
    %v57 = vadd.s32 %v50, 16
    %58 = vset.pattern.permute.xlu0 1
    %59 = vperm.xlu0 %58, %v57
    %v60 = vpop.permute.xlu0 %59
    %vm61 = vcmp.eq.s32.totalorder %v52, %v60
    %vm62 = vmor %vm56, %vm61
    %v63 = vsel %vm62, 1, 0
    %v64 = vcvt.s32.f32 %v63
    %v65 = vpack.c.bf16 %v64, %v64
    %v66 = vld [vmem:[#allocation2] sm:$0xff]
    %v67 = vld [vmem:[#allocation2 + $0x8] sm:$0xff]
    %v68 = vld [vmem:[#allocation2 + $0x10] sm:$0xff]
    %v69 = vld [vmem:[#allocation2 + $0x18] sm:$0xff]
    %v70 = vld [vmem:[#allocation2 + $0x20] sm:$0xff]
    %v71 = vld [vmem:[#allocation2 + $0x28] sm:$0xff]
    %v72 = vld [vmem:[#allocation2 + $0x30] sm:$0xff]
    %v73 = vld [vmem:[#allocation2 + $0x38] sm:$0xff]
    %v74 = vld [vmem:[#allocation2 + $0x40] sm:$0xff]
    %v75 = vld [vmem:[#allocation2 + $0x48] sm:$0xff]
    %v76 = vld [vmem:[#allocation2 + $0x50] sm:$0xff]
    %v77 = vld [vmem:[#allocation2 + $0x58] sm:$0xff]
    %v78 = vld [vmem:[#allocation2 + $0x60] sm:$0xff]
    %v79 = vld [vmem:[#allocation2 + $0x68] sm:$0xff]
    %v80 = vld [vmem:[#allocation2 + $0x70] sm:$0xff]
    %v81 = vld [vmem:[#allocation2 + $0x78] sm:$0xff]
    %v82 = vld [vmem:[%s2] sm:$0x3]
    %v84 = vlaneseq
    %v85 = vshrl.u32 %v84, 7
    %v86 = vsub.s32 0, %v85
    %v87 = vrot.slane %v82, %v86
    %v88 = vlaneseq
    %v89 = vshrl.u32 %v88, 7
    %v90 = vsub.s32 1, %v89
    %v91 = vrot.slane %v82, %v90
    %v110 = vunpack.c.l.b16 %v66
    %v111 = vunpack.c.h.b16 %v66
    %v112 = vunpack.c.l.b16 %v67
    %v113 = vunpack.c.h.b16 %v67
    %v114 = vunpack.c.l.b16 %v68
    %v115 = vunpack.c.h.b16 %v68
    %v116 = vunpack.c.l.b16 %v69
    %v117 = vunpack.c.h.b16 %v69
    %v118 = vunpack.c.l.b16 %v70
    %v119 = vunpack.c.h.b16 %v70
    %v120 = vunpack.c.l.b16 %v71
    %v121 = vunpack.c.h.b16 %v71
    %v122 = vunpack.c.l.b16 %v72
    %v123 = vunpack.c.h.b16 %v72
    %v124 = vunpack.c.l.b16 %v73
    %v125 = vunpack.c.h.b16 %v73
    %v126 = vunpack.c.l.b16 %v74
    %v127 = vunpack.c.h.b16 %v74
    %v128 = vunpack.c.l.b16 %v75
    %v129 = vunpack.c.h.b16 %v75
    %v130 = vunpack.c.l.b16 %v76
    %v131 = vunpack.c.h.b16 %v76
    %v132 = vunpack.c.l.b16 %v77
    %v133 = vunpack.c.h.b16 %v77
    %v134 = vunpack.c.l.b16 %v78
    %v135 = vunpack.c.h.b16 %v78
    %v136 = vunpack.c.l.b16 %v79
    %v137 = vunpack.c.h.b16 %v79
    %v138 = vunpack.c.l.b16 %v80
    %v139 = vunpack.c.h.b16 %v80
    %v140 = vunpack.c.l.b16 %v81
    %v141 = vunpack.c.h.b16 %v81
    %v142 = vpack.c.b16 %v112, %v110
    %v143 = vpack.c.b16 %v113, %v111
    %v144 = vpack.c.b16 %v116, %v114
    %v145 = vpack.c.b16 %v117, %v115
    %v146 = vpack.c.b16 %v120, %v118
    %v147 = vpack.c.b16 %v121, %v119
    %v148 = vpack.c.b16 %v124, %v122
    %v149 = vpack.c.b16 %v125, %v123
    %v150 = vpack.c.b16 %v128, %v126
    %v151 = vpack.c.b16 %v129, %v127
    %v152 = vpack.c.b16 %v132, %v130
    %v153 = vpack.c.b16 %v133, %v131
    %v154 = vpack.c.b16 %v136, %v134
    %v155 = vpack.c.b16 %v137, %v135
    %v156 = vpack.c.b16 %v140, %v138
    %v157 = vpack.c.b16 %v141, %v139
    %174 = vmatprep.subr.bf16.mxu0 %v143
    %175 = vmatpush1.bf16.msra.mxu0 %v142
    %176 = vmatprep.subr.bf16.mxu0 %v145
    %177 = vmatpush1.bf16.msra.mxu0 %v144
    %178 = vmatprep.subr.bf16.mxu0 %v147
    %179 = vmatpush1.bf16.msra.mxu0 %v146
    %180 = vmatprep.subr.bf16.mxu0 %v149
    %181 = vmatpush1.bf16.msra.mxu0 %v148
    %182 = vmatprep.subr.bf16.mxu0 %v151
    %183 = vmatpush1.bf16.msra.mxu0 %v150
    %184 = vmatprep.subr.bf16.mxu0 %v153
    %185 = vmatpush1.bf16.msra.mxu0 %v152
    %186 = vmatprep.subr.bf16.mxu0 %v155
    %187 = vmatpush1.bf16.msra.mxu0 %v154
    %188 = vmatprep.subr.bf16.mxu0 %v157
    %189 = vmatpush1.bf16.msra.mxu0 %v156
    %190 = vmatprep.subr.bf16.mxu0 0
    %191 = vmatpush1.bf16.msra.mxu0 0
    %192 = vmatprep.subr.bf16.mxu0 0
    %193 = vmatpush1.bf16.msra.mxu0 0
    %194 = vmatprep.subr.bf16.mxu0 0
    %195 = vmatpush1.bf16.msra.mxu0 0
    %196 = vmatprep.subr.bf16.mxu0 0
    %197 = vmatpush1.bf16.msra.mxu0 0
    %198 = vmatprep.subr.bf16.mxu0 0
    %199 = vmatpush1.bf16.msra.mxu0 0
    %200 = vmatprep.subr.bf16.mxu0 0
    %201 = vmatpush1.bf16.msra.mxu0 0
    %202 = vmatprep.subr.bf16.mxu0 0
    %203 = vmatpush1.bf16.msra.mxu0 0
    %204 = vmatprep.subr.bf16.mxu0 0
    %205 = vmatpush1.bf16.msra.mxu0 0
    %206 = vmatprep.mubr.bf16.mxu0 0
    %207 = vmatmul.mubr.bf16.gmra.mrb[0].mxu0 %v65
    %v208 = vpop.f32.mrb[0].mxu0
    %v209 = vadd.f32 %v87, %v208
    %v210 = vpop.f32.mrb[0].mxu0
    %v211 = vadd.f32 %v91, %v210
    %v212 = vpop.f32.mrb[0].mxu0
    %v213 = vpop.f32.mrb[0].mxu0
    %214 = vdwg.mxu0
    %v215 = vmax.f32 %v209, 0.0
    %v216 = vmax.f32 %v211, 0.0
    %v217 = vpack.c.bf16 %v215, %v215
    %v218 = vpack.c.bf16 %v216, %v216
    %v219 = vld [vmem:[#allocation5] sm:$0xf]
    %v220 = vld [vmem:[#allocation5 + $0x4] sm:$0xf]
    %v221 = vld [vmem:[#allocation5 + $0x8] sm:$0xf]
    %v222 = vld [vmem:[#allocation5 + $0xc] sm:$0xf]
    %v223 = vld [vmem:[#allocation5 + $0x10] sm:$0xf]
    %v224 = vld [vmem:[#allocation5 + $0x14] sm:$0xf]
    %v225 = vld [vmem:[#allocation5 + $0x18] sm:$0xf]
    %v226 = vld [vmem:[#allocation5 + $0x1c] sm:$0xf]
    %v227 = vld [vmem:[#allocation5 + $0x20] sm:$0xf]
    %v228 = vld [vmem:[#allocation5 + $0x24] sm:$0xf]
    %v229 = vld [vmem:[#allocation5 + $0x28] sm:$0xf]
    %v230 = vld [vmem:[#allocation5 + $0x2c] sm:$0xf]
    %v231 = vld [vmem:[#allocation5 + $0x30] sm:$0xf]
    %v232 = vld [vmem:[#allocation5 + $0x34] sm:$0xf]
    %v233 = vld [vmem:[#allocation5 + $0x38] sm:$0xf]
    %v234 = vld [vmem:[#allocation5 + $0x3c] sm:$0xf]
    %v235 = vld [vmem:[#allocation5 + $0x40] sm:$0xf]
    %v236 = vld [vmem:[#allocation5 + $0x44] sm:$0xf]
    %v237 = vld [vmem:[#allocation5 + $0x48] sm:$0xf]
    %v238 = vld [vmem:[#allocation5 + $0x4c] sm:$0xf]
    %v239 = vld [vmem:[#allocation5 + $0x50] sm:$0xf]
    %v240 = vld [vmem:[#allocation5 + $0x54] sm:$0xf]
    %v241 = vld [vmem:[#allocation5 + $0x58] sm:$0xf]
    %v242 = vld [vmem:[#allocation5 + $0x5c] sm:$0xf]
    %v243 = vld [vmem:[#allocation5 + $0x60] sm:$0xf]
    %v244 = vld [vmem:[#allocation5 + $0x64] sm:$0xf]
    %v245 = vld [vmem:[#allocation5 + $0x68] sm:$0xf]
    %v246 = vld [vmem:[#allocation5 + $0x6c] sm:$0xf]
    %v247 = vld [vmem:[#allocation5 + $0x70] sm:$0xf]
    %v248 = vld [vmem:[#allocation5 + $0x74] sm:$0xf]
    %v249 = vld [vmem:[#allocation5 + $0x78] sm:$0xf]
    %v250 = vld [vmem:[#allocation5 + $0x7c] sm:$0xf]
    %v251 = vld [vmem:[%s4] sm:$0x1]
    %v253 = vlaneseq
    %v254 = vshrl.u32 %v253, 7
    %v255 = vsub.s32 0, %v254
    %v256 = vrot.slane %v251, %v255
    %v290 = vunpack.c.l.b16 %v219
    %v291 = vunpack.c.l.b16 %v220
    %v292 = vunpack.c.l.b16 %v221
    %v293 = vunpack.c.l.b16 %v222
    %v294 = vunpack.c.l.b16 %v223
    %v295 = vunpack.c.l.b16 %v224
    %v296 = vunpack.c.l.b16 %v225
    %v297 = vunpack.c.l.b16 %v226
    %v298 = vunpack.c.l.b16 %v227
    %v299 = vunpack.c.l.b16 %v228
    %v300 = vunpack.c.l.b16 %v229
    %v301 = vunpack.c.l.b16 %v230
    %v302 = vunpack.c.l.b16 %v231
    %v303 = vunpack.c.l.b16 %v232
    %v304 = vunpack.c.l.b16 %v233
    %v305 = vunpack.c.l.b16 %v234
    %v306 = vunpack.c.l.b16 %v235
    %v307 = vunpack.c.l.b16 %v236
    %v308 = vunpack.c.l.b16 %v237
    %v309 = vunpack.c.l.b16 %v238
    %v310 = vunpack.c.l.b16 %v239
    %v311 = vunpack.c.l.b16 %v240
    %v312 = vunpack.c.l.b16 %v241
    %v313 = vunpack.c.l.b16 %v242
    %v314 = vunpack.c.l.b16 %v243
    %v315 = vunpack.c.l.b16 %v244
    %v316 = vunpack.c.l.b16 %v245
    %v317 = vunpack.c.l.b16 %v246
    %v318 = vunpack.c.l.b16 %v247
    %v319 = vunpack.c.l.b16 %v248
    %v320 = vunpack.c.l.b16 %v249
    %v321 = vunpack.c.l.b16 %v250
    %v322 = vpack.c.b16 %v291, %v290
    %v323 = vpack.c.b16 %v293, %v292
    %v324 = vpack.c.b16 %v295, %v294
    %v325 = vpack.c.b16 %v297, %v296
    %v326 = vpack.c.b16 %v299, %v298
    %v327 = vpack.c.b16 %v301, %v300
    %v328 = vpack.c.b16 %v303, %v302
    %v329 = vpack.c.b16 %v305, %v304
    %v330 = vpack.c.b16 %v307, %v306
    %v331 = vpack.c.b16 %v309, %v308
    %v332 = vpack.c.b16 %v311, %v310
    %v333 = vpack.c.b16 %v313, %v312
    %v334 = vpack.c.b16 %v315, %v314
    %v335 = vpack.c.b16 %v317, %v316
    %v336 = vpack.c.b16 %v319, %v318
    %v337 = vpack.c.b16 %v321, %v320
    %354 = vmatprep.subr.bf16.mxu0 0
    %355 = vmatpush1.bf16.msra.mxu0 %v322
    %356 = vmatprep.subr.bf16.mxu0 0
    %357 = vmatpush1.bf16.msra.mxu0 %v323
    %358 = vmatprep.subr.bf16.mxu0 0
    %359 = vmatpush1.bf16.msra.mxu0 %v324
    %360 = vmatprep.subr.bf16.mxu0 0
    %361 = vmatpush1.bf16.msra.mxu0 %v325
    %362 = vmatprep.subr.bf16.mxu0 0
    %363 = vmatpush1.bf16.msra.mxu0 %v326
    %364 = vmatprep.subr.bf16.mxu0 0
    %365 = vmatpush1.bf16.msra.mxu0 %v327
    %366 = vmatprep.subr.bf16.mxu0 0
    %367 = vmatpush1.bf16.msra.mxu0 %v328
    %368 = vmatprep.subr.bf16.mxu0 0
    %369 = vmatpush1.bf16.msra.mxu0 %v329
    %370 = vmatprep.subr.bf16.mxu0 0
    %371 = vmatpush1.bf16.msra.mxu0 %v330
    %372 = vmatprep.subr.bf16.mxu0 0
    %373 = vmatpush1.bf16.msra.mxu0 %v331
    %374 = vmatprep.subr.bf16.mxu0 0
    %375 = vmatpush1.bf16.msra.mxu0 %v332
    %376 = vmatprep.subr.bf16.mxu0 0
    %377 = vmatpush1.bf16.msra.mxu0 %v333
    %378 = vmatprep.subr.bf16.mxu0 0
    %379 = vmatpush1.bf16.msra.mxu0 %v334
    %380 = vmatprep.subr.bf16.mxu0 0
    %381 = vmatpush1.bf16.msra.mxu0 %v335
    %382 = vmatprep.subr.bf16.mxu0 0
    %383 = vmatpush1.bf16.msra.mxu0 %v336
    %384 = vmatprep.subr.bf16.mxu0 0
    %385 = vmatpush1.bf16.msra.mxu0 %v337
    %386 = vmatprep.mubr.bf16.mxu0 %v218
    %387 = vmatmul.mubr.bf16.gmra.mrb[0].mxu0 %v217
    %v388 = vpop.f32.mrb[0].mxu0
    %v389 = vadd.f32 %v256, %v388
    %v390 = vpop.f32.mrb[0].mxu0
    %v391 = vpop.f32.mrb[0].mxu0
    %v392 = vpop.f32.mrb[0].mxu0
    %393 = vdwg.mxu0
    %394 = vst [vmem:[#allocation7] sm:$0xff] %v389
    // Predicated region
    $region30: #{tpu_custom_call.1} parent=1 // pred_check
      _
    $region31: #{tpu_custom_call.1} parent=1 // pred_check_branch
      %396 = sbr.rel (0) target = $region33
    $region32: #{tpu_custom_call.1} parent=1 // pred_region
      %s398 = ssub.s32 128, 128
      %399 = vsyncadd [#allocation4], %s398
      %s401 = sshll.u32 [#allocation7], 4
      %s402 = int_to_ptr.vmem [resolvable:$true] %s401
      %404 = dma.vmem_to_hbm [thread:$0]  %s402, 128, %s5, [#allocation4]
    $region33: #{tpu_custom_call.1} parent=1 // pred_fallthru
      _
    // Predicated region
    $region34: #{tpu_custom_call.1} parent=1 // pred_check
      _
    $region35: #{tpu_custom_call.1} parent=1 // pred_check_branch
      %406 = sbr.rel (0) target = $region37
    $region36: #{tpu_custom_call.1} parent=1 // pred_region
      %407 = dma.done [#allocation4], 128
    $region37: #{tpu_custom_call.1} parent=1 // pred_fallthru
      _
    %408 = vsyncpa [#allocation3], 1
    %409 = vsyncpa [#allocation6], 1
    %410 = vsyncpa [#allocation4], 1

</llo_original>
